<compile_context>
chip_gen: v6e
topology: v6e:2x2x1
jax: 0.10.0
libtpu: 0.0.40
codegen_flags: <defaults>
</compile_context>

<pallas_src>
import functools

import jax
import jax.numpy as jnp
from jax.experimental import pallas as pl
from jax.experimental.pallas import tpu as pltpu

_LANES = 128            # tokens per lane-row
_ROW_TILE = 32          # sublane tile that satisfies int8(32)/bf16(16)/f32(8)
_MAX_BLOCK_ROWS = 2048  # rows per grid step (2048*128 = 262144 tokens)


def _round_up(a, b):
    return -(-a // b) * b


@functools.lru_cache(maxsize=1)
def _bf16_pair_low_is_class0():
    """Probe how XLA's bitcast_convert_type packs a (..., 2) bf16 pair into u32.

    Returns True if index 0 (class 0) lands in the low 16 bits, False if it
    lands in the high 16 bits, None if unrecognised (fall back to plane path).
    """
    try:
        probe = jnp.asarray([[1.0, 2.0]], dtype=jnp.bfloat16)   # 0x3F80, 0x4000
        bits = int(jax.device_get(
            jax.lax.bitcast_convert_type(probe, jnp.uint32))[0])
    except Exception:                      # unsupported bitcast -> fall back
        return None
    if bits == 0x40003F80:
        return True
    if bits == 0x3F804000:
        return False
    return None


def _power(base, gamma):
    """base**gamma for base >= 1, minimizing EUP (transcendental) work."""
    g = float(gamma)
    if g == 0.0:
        return jnp.ones_like(base)
    n = int(g)
    if g == n and 0 < n <= 8:              # small integer power: multiplies only
        r = base
        for _ in range(n - 1):
            r = r * base
        return r
    if g > 0 and (g - n) == 0.5 and n <= 8:  # half-integer: one sqrt + multiplies
        r = jnp.sqrt(base)
        for _ in range(n):
            r = r * base
        return r
    return jnp.exp(jnp.float32(g) * jnp.log(base))


def _finish(out_ref, tgt, x_t, lse, *, gamma, weights, total_tokens):
    """Shared tail: focal factor, masking (ignore_index + ragged bound),
    per-lane partial reductions, merged (1, 2, 128) output write."""
    TR, L = tgt.shape
    base_tok = pl.program_id(0) * (TR * L)
    row = jax.lax.broadcasted_iota(jnp.int32, (TR, L), 0)
    lane = jax.lax.broadcasted_iota(jnp.int32, (TR, L), 1)
    in_bounds = (base_tok + row * L + lane) < total_tokens
    valid = (tgt != -1) & in_bounds

    log_pt = x_t - lse                      # log-softmax at the target class
    if any(float(w) != 1.0 for w in weights):
        w_t = jnp.full(tgt.shape, weights[0], dtype=jnp.float32)
        for c in range(1, len(weights)):
            w_t = jnp.where(tgt == c, jnp.float32(weights[c]), w_t)
        ce = -w_t * log_pt                  # CrossEntropyLoss(weight, 'none')
    else:
        ce = -log_pt

    # NB: the reference uses the *log*-probability inside the focal factor.
    focal = jnp.where(valid, _power(1.0 - log_pt, gamma) * ce, 0.0)

    loss_row = jnp.sum(focal, axis=0, keepdims=True)                      # (1,L)
    cnt_row = jnp.sum(valid.astype(jnp.float32), axis=0, keepdims=True)   # (1,L)
    out_ref[...] = jnp.concatenate([loss_row, cnt_row], axis=0)[None]     # (1,2,L)


def _focal_kernel_packed(tgt_ref, packed_ref, out_ref, *, gamma, weights,
                         total_tokens, class0_low):
    """C==2, bf16 logits packed token-wise into u32 lanes (no pre-pass)."""
    tgt = tgt_ref[...].astype(jnp.int32)                      # int8 -> int32
    pk = packed_ref[...]                                      # (TR, 128) uint32
    lo = pltpu.bitcast(pk << 16, jnp.float32)                 # bf16 in low half
    hi = pltpu.bitcast(pk & jnp.uint32(0xFFFF0000), jnp.float32)
    x0, x1 = (lo, hi) if class0_low else (hi, lo)

    m = jnp.maximum(x0, x1)
    lse = m + jnp.log(1.0 + jnp.exp(-jnp.abs(x0 - x1)))       # 1 exp + 1 log
    x_t = jnp.where(tgt == 1, x1, x0)
    _finish(out_ref, tgt, x_t, lse, gamma=gamma, weights=weights,
            total_tokens=total_tokens)


def _focal_kernel_planes(tgt_ref, logits_ref, out_ref, *, gamma, weights,
                         total_tokens):
    """General path: dense per-class (C, TR, 128) planes (any dtype / C)."""
    C = logits_ref.shape[0]
    tgt = tgt_ref[...].astype(jnp.int32)

    if C == 2:
        x0 = logits_ref[0].astype(jnp.float32)
        x1 = logits_ref[1].astype(jnp.float32)
        m = jnp.maximum(x0, x1)
        lse = m + jnp.log(1.0 + jnp.exp(-jnp.abs(x0 - x1)))
        x_t = jnp.where(tgt == 1, x1, x0)
    else:
        # Two passes re-reading from VMEM keep live f32 temporaries small,
        # which is what lets block_rows grow to 2048 without extra scratch.
        x0 = logits_ref[0].astype(jnp.float32)
        m = x0
        for c in range(1, C):
            m = jnp.maximum(m, logits_ref[c].astype(jnp.float32))
        s = jnp.exp(x0 - m)
        x_t = x0
        for c in range(1, C):
            xc = logits_ref[c].astype(jnp.float32)
            s = s + jnp.exp(xc - m)
            x_t = jnp.where(tgt == c, xc, x_t)
        lse = m + jnp.log(s)

    _finish(out_ref, tgt, x_t, lse, gamma=gamma, weights=weights,
            total_tokens=total_tokens)


def focal_loss_3d(logits, target, *, gamma=2.0, ce_weights=(1.0, 1.0),
                  reduction="mean"):
    """logits: (B, N, C) float (f32 or bf16); target: (B, N) int, -1 = ignore."""
    if reduction not in ("mean", "sum"):
        # TODO(synk): reduction='none' (variable-length masked vector) has no
        # static-shape Pallas equivalent.
        raise NotImplementedError("reduction='none' not supported")

    B, N, C = logits.shape
    assert C == len(ce_weights)
    assert C < 128, "int8 target packing assumes fewer than 128 classes"
    T = B * N

    rows = pl.cdiv(T, _LANES)
    rows_arr = max(rows, _ROW_TILE)            # array holds >= one row tile
    T_arr = rows_arr * _LANES                  # == T iff T%128==0 and rows>=32

    # Block / grid sizing: big blocks, but always >= 2 grid steps when the
    # input spans more than one tile so v7x's two TensorCores both get work.
    n_blocks = max(pl.cdiv(rows_arr, _MAX_BLOCK_ROWS), 2)
    block_rows = _round_up(pl.cdiv(rows_arr, n_blocks), _ROW_TILE)
    grid_len = pl.cdiv(rows_arr, block_rows)

    weights = tuple(float(w) for w in ce_weights)
    g = float(gamma)

    # Targets: int8, padded with ignore_index only when a pad is unavoidable.
    tgt_flat = target.reshape(T).astype(jnp.int8)

    use_packed = (C == 2 and logits.dtype == jnp.bfloat16)
    low_is_c0 = _bf16_pair_low_is_class0() if use_packed else None
    use_packed = use_packed and (low_is_c0 is not None)

    if use_packed:
        # (T, 2) bf16 -> (T,) u32: pure bitcast/reshape, no extra HBM pass.
        x_flat = jax.lax.bitcast_convert_type(logits.reshape(T, 2), jnp.uint32)
        if T_arr != T:
            x_flat = jnp.pad(x_flat, (0, T_arr - T))
            tgt_flat = jnp.pad(tgt_flat, (0, T_arr - T), constant_values=-1)
        x_in = x_flat.reshape(rows_arr, _LANES)
        kernel = functools.partial(
            _focal_kernel_packed, gamma=g, weights=weights, total_tokens=T,
            class0_low=bool(low_is_c0))
        logits_spec = pl.BlockSpec((block_rows, _LANES), lambda i: (i, 0))
        logits_bytes = T_arr * 4
    else:
        # One fused transpose(+pad) pass into per-class planes (caller dtype).
        x = jnp.transpose(logits.reshape(T, C))                # (C, T)
        if T_arr != T:
            x = jnp.pad(x, ((0, 0), (0, T_arr - T)))
            tgt_flat = jnp.pad(tgt_flat, (0, T_arr - T), constant_values=-1)
        x_in = x.reshape(C, rows_arr, _LANES)
        kernel = functools.partial(
            _focal_kernel_planes, gamma=g, weights=weights, total_tokens=T)
        logits_spec = pl.BlockSpec((C, block_rows, _LANES), lambda i: (0, i, 0))
        logits_bytes = C * T_arr * x_in.dtype.itemsize

    tgt_in = tgt_flat.reshape(rows_arr, _LANES)

    if g == int(g):
        pow_tr = 0
    elif (g - int(g)) == 0.5:
        pow_tr = 1
    else:
        pow_tr = 2
    cost = pl.CostEstimate(
        flops=T_arr * (12 * C + 24),
        transcendentals=T_arr * ((2 if C == 2 else C + 1) + pow_tr),
        bytes_accessed=logits_bytes + T_arr + grid_len * 2 * _LANES * 4)

    parts = pl.pallas_call(
        kernel,
        out_shape=jax.ShapeDtypeStruct((grid_len, 2, _LANES), jnp.float32),
        grid_spec=pltpu.PrefetchScalarGridSpec(
            num_scalar_prefetch=0,
            grid=(grid_len,),
            in_specs=[
                pl.BlockSpec((block_rows, _LANES), lambda i: (i, 0)),
                logits_spec,
            ],
            out_specs=pl.BlockSpec((1, 2, _LANES), lambda i: (i, 0, 0)),
        ),
        compiler_params=pltpu.CompilerParams(
            dimension_semantics=("parallel",),
            vmem_limit_bytes=64 * 1024 * 1024),
        cost_estimate=cost,
    )(tgt_in, x_in)

    total = jnp.sum(parts[:, 0, :])
    if reduction == "mean":
        # NB: like the PyTorch reference, an all-ignored batch yields NaN.
        return total / jnp.sum(parts[:, 1, :])
    return total


def _ref_focal_loss(logits, target, gamma, ce_weights, reduction):
    B, N, C = logits.shape
    logp = jax.nn.log_softmax(logits.astype(jnp.float32), axis=-1)
    flat_lp = logp.reshape(-1, C)
    flat_t = target.reshape(-1)
    valid = flat_t != -1
    tclip = jnp.clip(flat_t, 0, C - 1)
    log_pt = jnp.take_along_axis(flat_lp, tclip[:, None], axis=1)[:, 0]
    w = jnp.asarray(ce_weights, jnp.float32)[tclip]
    ce = -w * log_pt
    loss = jnp.where(valid, (1.0 - log_pt) ** gamma * ce, 0.0)
    if reduction == "mean":
        return jnp.sum(loss) / jnp.sum(valid.astype(jnp.float32))
    return jnp.sum(loss)


if __name__ == "__main__":
    key = jax.random.PRNGKey(0)
    k1, k2, k3, k4, k5, k6 = jax.random.split(key, 6)

    # Case 1: module defaults (2-class, gamma=2, mean), f32 (plane path), tiny.
    B, N, C = 2, 16, 2
    logits = jax.random.normal(k1, (B, N, C), dtype=jnp.float32)
    target = jax.random.randint(k2, (B, N), 0, C).astype(jnp.int32)
    target = target.at[0, 3].set(-1).at[1, 7].set(-1)      # ignore_index entries
    out = jax.block_until_ready(focal_loss_3d(logits, target))
    ref = _ref_focal_loss(logits, target, 2.0, (1.0, 1.0), "mean")
    assert jnp.abs(out - ref) < 1e-4 * (1.0 + jnp.abs(ref)), (out, ref)

    # Case 2: 3 classes, half-integer gamma, class weights, 'sum', T % 128 != 0.
    B2, N2, C2 = 2, 40, 3
    logits2 = jax.random.normal(k3, (B2, N2, C2), dtype=jnp.float32)
    target2 = jax.random.randint(k4, (B2, N2), -1, C2).astype(jnp.int32)
    w2 = (0.5, 1.0, 2.0)
    out2 = jax.block_until_ready(
        focal_loss_3d(logits2, target2, gamma=1.5, ce_weights=w2, reduction="sum"))
    ref2 = _ref_focal_loss(logits2, target2, 1.5, w2, "sum")
    assert jnp.abs(out2 - ref2) < 1e-4 * (1.0 + jnp.abs(ref2)), (out2, ref2)

    # Case 3: bf16 C=2 packed (bitcast) path, tiny shape.
    out3 = jax.block_until_ready(focal_loss_3d(logits.astype(jnp.bfloat16), target))
    ref3 = _ref_focal_loss(logits.astype(jnp.bfloat16), target, 2.0, (1.0, 1.0), "mean")
    assert jnp.abs(out3 - ref3) < 1e-4 * (1.0 + jnp.abs(ref3)), (out3, ref3)

    # Case 4: bf16 packed path on a 16x16x16-voxel volume: T % 128 == 0 so no
    # wrapper pad, grid_len == 2 so both v7x TensorCores get work.
    B4, N4 = 2, 16 * 16 * 16
    logits4 = jax.random.normal(k5, (B4, N4, 2), dtype=jnp.bfloat16)
    target4 = jax.random.randint(k6, (B4, N4), -1, 2).astype(jnp.int32)
    out4 = jax.block_until_ready(focal_loss_3d(logits4, target4))
    ref4 = _ref_focal_loss(logits4, target4, 2.0, (1.0, 1.0), "mean")
    assert jnp.abs(out4 - ref4) < 1e-4 * (1.0 + jnp.abs(ref4)), (out4, ref4)

    # Case 5: ragged grid (40 rows, 32-row blocks) exercises the in-kernel
    # iota bound mask on the Pallas-clipped final block.
    B5, N5 = 2, 2560
    logits5 = jax.random.normal(k1, (B5, N5, 2), dtype=jnp.bfloat16)
    target5 = jax.random.randint(k2, (B5, N5), -1, 2).astype(jnp.int32)
    out5 = jax.block_until_ready(focal_loss_3d(logits5, target5, reduction="sum"))
    ref5 = _ref_focal_loss(logits5, target5, 2.0, (1.0, 1.0), "sum")
    assert jnp.abs(out5 - ref5) < 1e-4 * (1.0 + jnp.abs(ref5)), (out5, ref5)

    print("KERNEL_OK")
</pallas_src>

<mosaic_0001>
module attributes {stable_mosaic.version = 11 : i64} {
  func.func @_focal_kernel_planes(%arg0: i32, %arg1: memref<32x128xi8, #tpu.memory_space<vmem>>, %arg2: memref<2x32x128xf32, #tpu.memory_space<vmem>>, %arg3: memref<1x2x128xf32, #tpu.memory_space<vmem>>) attributes {dimension_semantics = [#tpu.dimension_semantics<parallel>], iteration_bounds = array<i64: 1>, scalar_prefetch = 0 : i64, scratch_operands = 0 : i64, tpu.core_type = #tpu.core_type<tc>, window_params = [{transform_indices = @transform_0, window_bounds = array<i64: 32, 128>}, {transform_indices = @transform_1, window_bounds = array<i64: 2, 32, 128>}, {transform_indices = @transform_2, window_bounds = array<i64: 1, 2, 128>}]} {
    %c0 = arith.constant 0 : index
    %c0_0 = arith.constant 0 : index
    %0 = vector.load %arg1[%c0, %c0_0] : memref<32x128xi8, #tpu.memory_space<vmem>>, vector<32x128xi8>
    %1 = arith.extsi %0 : vector<32x128xi8> to vector<32x128xi32>
    %c0_1 = arith.constant 0 : index
    %c0_2 = arith.constant 0 : index
    %c0_3 = arith.constant 0 : index
    %2 = vector.load %arg2[%c0_1, %c0_2, %c0_3] : memref<2x32x128xf32, #tpu.memory_space<vmem>>, vector<1x32x128xf32>
    %3 = vector.shape_cast %2 : vector<1x32x128xf32> to vector<32x128xf32>
    %c1 = arith.constant 1 : index
    %c0_4 = arith.constant 0 : index
    %c0_5 = arith.constant 0 : index
    %4 = vector.load %arg2[%c1, %c0_4, %c0_5] : memref<2x32x128xf32, #tpu.memory_space<vmem>>, vector<1x32x128xf32>
    %5 = vector.shape_cast %4 : vector<1x32x128xf32> to vector<32x128xf32>
    %6 = arith.maximumf %3, %5 : vector<32x128xf32>
    %7 = arith.subf %3, %5 : vector<32x128xf32>
    %8 = math.absf %7 : vector<32x128xf32>
    %cst = arith.constant 0.000000e+00 : f32
    %9 = vector.broadcast %cst : f32 to vector<32x128xf32>
    %10 = arith.subf %9, %8 : vector<32x128xf32>
    %11 = math.exp %10 : vector<32x128xf32>
    %cst_6 = arith.constant 1.000000e+00 : f32
    %12 = vector.broadcast %cst_6 : f32 to vector<32x128xf32>
    %13 = arith.addf %12, %11 : vector<32x128xf32>
    %14 = math.log %13 : vector<32x128xf32>
    %15 = arith.addf %6, %14 : vector<32x128xf32>
    %c1_i32 = arith.constant 1 : i32
    %16 = vector.broadcast %c1_i32 : i32 to vector<32x128xi32>
    %17 = arith.cmpi eq, %1, %16 : vector<32x128xi32>
    %18 = arith.select %17, %5, %3 : vector<32x128xi1>, vector<32x128xf32>
    %c4096_i32 = arith.constant 4096 : i32
    %19 = arith.muli %arg0, %c4096_i32 : i32
    %20 = tpu.iota {dimensions = array<i32: 0>} : vector<32x128xi32>
    %21 = tpu.iota {dimensions = array<i32: 1>} : vector<32x128xi32>
    %c128_i32 = arith.constant 128 : i32
    %22 = vector.broadcast %c128_i32 : i32 to vector<32x128xi32>
    %23 = arith.muli %20, %22 : vector<32x128xi32>
    %24 = vector.broadcast %19 : i32 to vector<32x128xi32>
    %25 = arith.addi %24, %23 : vector<32x128xi32>
    %26 = arith.addi %25, %21 : vector<32x128xi32>
    %c32_i32 = arith.constant 32 : i32
    %27 = vector.broadcast %c32_i32 : i32 to vector<32x128xi32>
    %28 = arith.cmpi slt, %26, %27 : vector<32x128xi32>
    %c-1_i32 = arith.constant -1 : i32
    %29 = vector.broadcast %c-1_i32 : i32 to vector<32x128xi32>
    %30 = arith.cmpi ne, %1, %29 : vector<32x128xi32>
    %31 = arith.andi %30, %28 : vector<32x128xi1>
    %32 = arith.subf %18, %15 : vector<32x128xf32>
    %cst_7 = arith.constant 0.000000e+00 : f32
    %33 = vector.broadcast %cst_7 : f32 to vector<32x128xf32>
    %34 = arith.subf %33, %32 : vector<32x128xf32>
    %cst_8 = arith.constant 1.000000e+00 : f32
    %35 = vector.broadcast %cst_8 : f32 to vector<32x128xf32>
    %36 = arith.subf %35, %32 : vector<32x128xf32>
    %37 = arith.mulf %36, %36 : vector<32x128xf32>
    %38 = arith.mulf %37, %34 : vector<32x128xf32>
    %cst_9 = arith.constant 0.000000e+00 : f32
    %39 = vector.broadcast %cst_9 : f32 to vector<32x128xf32>
    %40 = arith.select %31, %38, %39 : vector<32x128xi1>, vector<32x128xf32>
    %cst_10 = arith.constant dense<0.000000e+00> : vector<128xf32>
    %41 = vector.multi_reduction <add>, %40, %cst_10 [0] : vector<32x128xf32> to vector<128xf32>
    %42 = vector.shape_cast %41 : vector<128xf32> to vector<1x128xf32>
    %43 = arith.extui %31 : vector<32x128xi1> to vector<32x128xi32>
    %44 = arith.sitofp %43 : vector<32x128xi32> to vector<32x128xf32>
    %cst_11 = arith.constant dense<0.000000e+00> : vector<128xf32>
    %45 = vector.multi_reduction <add>, %44, %cst_11 [0] : vector<32x128xf32> to vector<128xf32>
    %46 = vector.shape_cast %45 : vector<128xf32> to vector<1x128xf32>
    %47 = tpu.concatenate %42, %46 in 0 : vector<1x128xf32>, vector<1x128xf32> -> vector<2x128xf32>
    %48 = vector.shape_cast %47 : vector<2x128xf32> to vector<1x2x128xf32>
    %c0_12 = arith.constant 0 : index
    %c0_13 = arith.constant 0 : index
    %c0_14 = arith.constant 0 : index
    %49 = vector.load %arg3[%c0_12, %c0_13, %c0_14] : memref<1x2x128xf32, #tpu.memory_space<vmem>>, vector<1x2x128xf32>
    tpu.vector_store %arg3[%c0_12, %c0_13, %c0_14], %48 {strides = array<i32>} : memref<1x2x128xf32, #tpu.memory_space<vmem>>, vector<1x2x128xf32>,
    return
  }
  func.func @transform_0(%arg0: i32) -> (i32, i32) {
    %c0_i32 = arith.constant 0 : i32
    %c0_i32_0 = arith.constant 0 : i32
    return %arg0, %c0_i32 : i32, i32
  }
  func.func @transform_1(%arg0: i32) -> (i32, i32, i32) {
    %c0_i32 = arith.constant 0 : i32
    %c0_i32_0 = arith.constant 0 : i32
    %c0_i32_1 = arith.constant 0 : i32
    return %c0_i32, %arg0, %c0_i32_0 : i32, i32, i32
  }
  func.func @transform_2(%arg0: i32) -> (i32, i32, i32) {
    %c0_i32 = arith.constant 0 : i32
    %c0_i32_0 = arith.constant 0 : i32
    %c0_i32_1 = arith.constant 0 : i32
    return %arg0, %c0_i32, %c0_i32_0 : i32, i32, i32
  }
}

</mosaic_0001>

<llo_original>
// kernel: tpu_custom_call.1
$region0: #{tpu_custom_call.1}
  #allocation0 [shape = 'u32[]', space=smem, size = 0x4, offset = 0x4, fixed_abs, tag = 'smem constant byte address 0x4 - core index']
  #allocation1 [shape = 'u32[144,128]{1,0:T(1,128)}', space=vmem, size = 0x12000, scoped, tag = 'internal scratch']
  %s0 = inlined_call_operand.hbm [shape: s8[32,128], index: 0, kind: input, shape index: {}]
  %s1 = inlined_call_operand.hbm [shape: f32[2,32,128], index: 1, kind: input, shape index: {}]
  %s2 = inlined_call_operand.hbm [shape: f32[1,2,128], index: 2, kind: output, shape index: {}]
  %s3 = sld [smem:[#allocation0]]
  $region26: #{tpu_custom_call.1} parent=0
    _
  %s5 = ssub.s32 1, %s3
  %s6 = scalar_select 0, %s5, %s3
  $region1: #{tpu_custom_call.1} parent=0
    #allocation2 [shape = 'u8[4096]{0}', space=vmem, size = 0x1000, scoped, tag = 'input window, operand 0, single buffered']
    #allocation3 [shape = 's32[1]{0}', space=sflag, size = 0x4, scoped, tag = 'scoped memory for tpu_custom_call.1']
    #allocation4 [shape = 's32[1]{0}', space=sflag, size = 0x4, scoped, tag = 'scoped memory for tpu_custom_call.1']
    #allocation5 [shape = 'u8[32768]{0}', space=vmem, size = 0x8000, scoped, tag = 'input window, operand 1, single buffered']
    #allocation6 [shape = 's32[1]{0}', space=sflag, size = 0x4, scoped, tag = 'scoped memory for tpu_custom_call.1']
    #allocation7 [shape = 'u8[1024]{0}', space=vmem, size = 0x400, scoped, tag = 'output window, operand 0, single buffered']
    %7 = vsyncpa [#allocation3], 0
    %8 = vsyncpa [#allocation6], 0
    %9 = vsyncpa [#allocation4], 0
    // Predicated region
    $region2: #{tpu_custom_call.1} parent=1 // pred_check
      _
    $region3: #{tpu_custom_call.1} parent=1 // pred_check_branch
      %11 = sbr.rel (0) target = $region5
    $region4: #{tpu_custom_call.1} parent=1 // pred_region
      %s13 = ssub.s32 128, 128
      %14 = vsyncadd [#allocation3], %s13
      %s16 = sshll.u32 [#allocation2], 4
      %s17 = int_to_ptr.vmem [resolvable:$true] %s16
      %19 = dma.hbm_to_vmem [thread:$0]  %s0, 128, %s17, [#allocation3]
    $region5: #{tpu_custom_call.1} parent=1 // pred_fallthru
      _
    // Predicated region
    $region6: #{tpu_custom_call.1} parent=1 // pred_check
      _
    $region7: #{tpu_custom_call.1} parent=1 // pred_check_branch
      %21 = sbr.rel (0) target = $region9
    $region8: #{tpu_custom_call.1} parent=1 // pred_region
      %s23 = ssub.s32 1024, 1024
      %24 = vsyncadd [#allocation6], %s23
      %s25 = sshll.u32 [#allocation5], 4
      %s26 = int_to_ptr.vmem [resolvable:$true] %s25
      %31 = dma.hbm_to_vmem [thread:$0]  %s1, 1024, %s26, [#allocation6], 128, 128, 8
    $region9: #{tpu_custom_call.1} parent=1 // pred_fallthru
      _
    // Predicated region
    $region10: #{tpu_custom_call.1} parent=1 // pred_check
      _
    $region11: #{tpu_custom_call.1} parent=1 // pred_check_branch
      %33 = sbr.rel (0) target = $region13
    $region12: #{tpu_custom_call.1} parent=1 // pred_region
      %34 = dma.done [#allocation3], 128
    $region13: #{tpu_custom_call.1} parent=1 // pred_fallthru
      _
    // Predicated region
    $region14: #{tpu_custom_call.1} parent=1 // pred_check
      _
    $region15: #{tpu_custom_call.1} parent=1 // pred_check_branch
      %36 = sbr.rel (0) target = $region17
    $region16: #{tpu_custom_call.1} parent=1 // pred_region
      %37 = dma.done [#allocation6], 1024
    $region17: #{tpu_custom_call.1} parent=1 // pred_fallthru
      _
    %v38 = vld [vmem:[#allocation2] sm:$0xff]
    %v39 = vunpack.c.0.s8 %v38
    %v40 = vunpack.c.1.s8 %v38
    %v41 = vunpack.c.2.s8 %v38
    %v42 = vunpack.c.3.s8 %v38
    %v43 = vld [vmem:[#allocation5] sm:$0xff]
    %v44 = vld [vmem:[#allocation5 + $0x8] sm:$0xff]
    %v45 = vld [vmem:[#allocation5 + $0x10] sm:$0xff]
    %v46 = vld [vmem:[#allocation5 + $0x18] sm:$0xff]
    %s47 = scalar_lea.vmem [#allocation5], 32
    %v48 = vld [vmem:[%s47] sm:$0xff]
    %v49 = vld [vmem:[%s47 + $0x8] sm:$0xff]
    %v50 = vld [vmem:[%s47 + $0x10] sm:$0xff]
    %v51 = vld [vmem:[%s47 + $0x18] sm:$0xff]
    %v52 = vmax.f32 %v43, %v48
    %v53 = vmax.f32 %v44, %v49
    %v54 = vmax.f32 %v45, %v50
    %v55 = vmax.f32 %v46, %v51
    %v56 = vsub.f32 %v43, %v48
    %v57 = vsub.f32 %v44, %v49
    %v58 = vsub.f32 %v45, %v50
    %v59 = vsub.f32 %v46, %v51
    %v60 = vand.u32 2147483647, %v56
    %v61 = vand.u32 2147483647, %v57
    %v62 = vand.u32 2147483647, %v58
    %v63 = vand.u32 2147483647, %v59
    %v64 = vsub.f32 0.0, %v60
    %v65 = vsub.f32 0.0, %v61
    %v66 = vsub.f32 0.0, %v62
    %v67 = vsub.f32 0.0, %v63
    %v68 = vmul.f32 %v64, 1.442695
    %v69 = vpow.pop %v68
    %v70 = vmul.f32 %v65, 1.442695
    %v71 = vpow.pop %v70
    %v72 = vmul.f32 %v66, 1.442695
    %v73 = vpow.pop %v72
    %v74 = vmul.f32 %v67, 1.442695
    %v75 = vpow.pop %v74
    %v76 = vadd.f32 %v69, 1.0
    %v77 = vadd.f32 %v71, 1.0
    %v78 = vadd.f32 %v73, 1.0
    %v79 = vadd.f32 %v75, 1.0
    %v80 = vlog2.pop %v76
    %v81 = vmul.f32 %v80, 0.6931472
    %v82 = vlog2.pop %v77
    %v83 = vmul.f32 %v82, 0.6931472
    %v84 = vlog2.pop %v78
    %v85 = vmul.f32 %v84, 0.6931472
    %v86 = vlog2.pop %v79
    %v87 = vmul.f32 %v86, 0.6931472
    %v88 = vadd.f32 %v52, %v81
    %v89 = vadd.f32 %v53, %v83
    %v90 = vadd.f32 %v54, %v85
    %v91 = vadd.f32 %v55, %v87
    %vm92 = vcmp.eq.s32.totalorder %v39, 1
    %vm93 = vcmp.eq.s32.totalorder %v40, 1
    %vm94 = vcmp.eq.s32.totalorder %v41, 1
    %vm95 = vcmp.eq.s32.totalorder %v42, 1
    %v96 = vsel %vm92, %v48, %v43
    %v97 = vsel %vm93, %v49, %v44
    %v98 = vsel %vm94, %v50, %v45
    %v99 = vsel %vm95, %v51, %v46
    %s100 = smul.u32 0, 4096
    %v101 = vlaneseq
    %v102 = vshrl.u32 %v101, 7
    %v103 = vadd.s32 %v102, 8
    %v104 = vadd.s32 %v102, 16
    %v105 = vadd.s32 %v102, 24
    %v106 = vlaneseq
    %v107 = vand.u32 %v106, 127
    %v108 = vmul.u32 %v102, 128
    %v109 = vmul.u32 %v103, 128
    %v110 = vmul.u32 %v104, 128
    %v111 = vmul.u32 %v105, 128
    %v112 = vstv %s100
    %v113 = vadd.s32 %v112, %v108
    %v114 = vadd.s32 %v112, %v109
    %v115 = vadd.s32 %v112, %v110
    %v116 = vadd.s32 %v112, %v111
    %v117 = vadd.s32 %v113, %v107
    %v118 = vadd.s32 %v114, %v107
    %v119 = vadd.s32 %v115, %v107
    %v120 = vadd.s32 %v116, %v107
    %vm121 = vcmp.lt.s32.totalorder %v117, 32
    %vm122 = vcmp.lt.s32.totalorder %v118, 32
    %vm123 = vcmp.lt.s32.totalorder %v119, 32
    %vm124 = vcmp.lt.s32.totalorder %v120, 32
    %vm125 = vcmp.ne.s32.totalorder %v39, 4294967295
    %vm126 = vcmp.ne.s32.totalorder %v40, 4294967295
    %vm127 = vcmp.ne.s32.totalorder %v41, 4294967295
    %vm128 = vcmp.ne.s32.totalorder %v42, 4294967295
    %vm129 = vmand %vm125, %vm121
    %vm130 = vmand %vm126, %vm122
    %vm131 = vmand %vm127, %vm123
    %vm132 = vmand %vm128, %vm124
    %v133 = vsub.f32 %v96, %v88
    %v134 = vsub.f32 %v97, %v89
    %v135 = vsub.f32 %v98, %v90
    %v136 = vsub.f32 %v99, %v91
    %v137 = vsub.f32 0.0, %v133
    %v138 = vsub.f32 0.0, %v134
    %v139 = vsub.f32 0.0, %v135
    %v140 = vsub.f32 0.0, %v136
    %v141 = vsub.f32 1.0, %v133
    %v142 = vsub.f32 1.0, %v134
    %v143 = vsub.f32 1.0, %v135
    %v144 = vsub.f32 1.0, %v136
    %v145 = vmul.f32 %v141, %v141
    %v146 = vmul.f32 %v142, %v142
    %v147 = vmul.f32 %v143, %v143
    %v148 = vmul.f32 %v144, %v144
    %v149 = vmul.f32 %v145, %v137
    %v150 = vmul.f32 %v146, %v138
    %v151 = vmul.f32 %v147, %v139
    %v152 = vmul.f32 %v148, %v140
    %v153 = vsel %vm129, %v149, 0.0
    %v154 = vsel %vm130, %v150, 0.0
    %v155 = vsel %vm131, %v151, 0.0
    %v156 = vsel %vm132, %v152, 0.0
    %v157 = vadd.f32 %v153, %v154
    %v158 = vadd.f32 %v157, %v155
    %v159 = vadd.f32 %v158, %v156
    %v160 = vrot.slane %v159, 4
    %v161 = vadd.f32 %v159, %v160
    %v162 = vrot.slane %v161, 2
    %v163 = vadd.f32 %v161, %v162
    %v164 = vrot.slane %v163, 1
    %v165 = vadd.f32 %v163, %v164
    %v166 = vsel %vm129, 1, 0
    %v167 = vsel %vm130, 1, 0
    %v168 = vsel %vm131, 1, 0
    %v169 = vsel %vm132, 1, 0
    %v170 = vcvt.s32.f32 %v166
    %v171 = vcvt.s32.f32 %v167
    %v172 = vcvt.s32.f32 %v168
    %v173 = vcvt.s32.f32 %v169
    %v174 = vadd.f32 %v170, %v171
    %v175 = vadd.f32 %v174, %v172
    %v176 = vadd.f32 %v175, %v173
    %v177 = vrot.slane %v176, 4
    %v178 = vadd.f32 %v176, %v177
    %v179 = vrot.slane %v178, 2
    %v180 = vadd.f32 %v178, %v179
    %v181 = vrot.slane %v180, 1
    %v182 = vadd.f32 %v180, %v181
    %vm183 = vcmask 1040384
    %v184 = vsel %vm183, %v165, %v182
    %185 = vst [vmem:[#allocation7] sm:$0x3] %v184
    // Predicated region
    $region18: #{tpu_custom_call.1} parent=1 // pred_check
      _
    $region19: #{tpu_custom_call.1} parent=1 // pred_check_branch
      %187 = sbr.rel (0) target = $region21
    $region20: #{tpu_custom_call.1} parent=1 // pred_region
      %s189 = ssub.s32 32, 32
      %190 = vsyncadd [#allocation4], %s189
      %s192 = sshll.u32 [#allocation7], 4
      %s193 = int_to_ptr.vmem [resolvable:$true] %s192
      %195 = dma.vmem_to_hbm [thread:$0]  %s193, 32, %s2, [#allocation4]
    $region21: #{tpu_custom_call.1} parent=1 // pred_fallthru
      _
    // Predicated region
    $region22: #{tpu_custom_call.1} parent=1 // pred_check
      _
    $region23: #{tpu_custom_call.1} parent=1 // pred_check_branch
      %197 = sbr.rel (0) target = $region25
    $region24: #{tpu_custom_call.1} parent=1 // pred_region
      %198 = dma.done [#allocation4], 32
    $region25: #{tpu_custom_call.1} parent=1 // pred_fallthru
      _
    %199 = vsyncpa [#allocation3], 1
    %200 = vsyncpa [#allocation6], 1
    %201 = vsyncpa [#allocation4], 1

</llo_original>
